<compile_context>
chip_gen: v5e
topology: v5e:2x2
jax: 0.10.0
libtpu: 0.0.40
codegen_flags: <defaults>
</compile_context>

<pallas_src>
import functools

import jax
import jax.numpy as jnp
from jax.experimental import pallas as pl
from jax.experimental.pallas import tpu as pltpu


def _edge_ce_kernel(x_ref, t_ref, o_ref, *, n_rows, tile_m):
    # x_ref: (TM, D) logits tile; t_ref: (TM, 1) int32 targets (-1 == masked);
    # o_ref: (1, 1, 1) f32 per-core running sum (resident across the inner axis).
    @pl.when(pl.program_id(1) == 0)
    def _():
        o_ref[...] = jnp.zeros_like(o_ref)

    x = x_ref[...].astype(jnp.float32)            # (TM, D)
    t = t_ref[...]                                # (TM, 1) int32

    # stable logsumexp over the class axis (lanes)
    mx = jnp.max(x, axis=-1, keepdims=True)
    lse = mx + jnp.log(jnp.sum(jnp.exp(x - mx), axis=-1, keepdims=True))

    # gather the target logit via a one-hot compare (no dynamic gather on TPU)
    cols = jax.lax.broadcasted_iota(jnp.int32, x.shape, 1)
    tgt_logit = jnp.sum(jnp.where(cols == t, x, 0.0), axis=-1, keepdims=True)

    # validity: row really exists (tail / duplicated clamped block) AND not padded.
    blk = pl.program_id(0) * pl.num_programs(1) + pl.program_id(1)
    row0 = blk * tile_m
    rows = row0 + jax.lax.broadcasted_iota(jnp.int32, (tile_m, 1), 0)
    valid = jnp.logical_and(rows < n_rows, t >= 0)

    # jnp.where (not a multiply) so garbage in out-of-bounds rows never leaks
    # inf/nan into the sum.
    loss = jnp.where(valid, lse - tgt_logit, 0.0)
    o_ref[...] += jnp.sum(loss)


def _round_up(x, m):
    return ((x + m - 1) // m) * m


@functools.partial(
    jax.jit, static_argnames=("node_pad_token", "tile_m", "n_split"))
def edge_criterion(logits, target, nodes, *, node_pad_token=0,
                   tile_m=2048, n_split=2):
    """Pallas implementation of EdgeCriterion.forward with reduction='sum'.

    logits: [B, L, L, D] float (f32 or bf16 -- cast to f32 in-kernel)
    target: [B, L, L]    int
    nodes:  [B, L]       int
    returns scalar f32: sum of cross-entropy over non-padded (i, j) edge pairs.
    """
    B, L, L2, D = logits.shape
    assert L2 == L
    N = B * L * L

    node_ok = nodes != node_pad_token                       # [B, L]
    pad_mask = node_ok[:, :, None] & node_ok[:, None, :]    # [B, L, L]

    x = logits.reshape(N, D)                                 # free reshape
    t = jnp.where(pad_mask, target.astype(jnp.int32), -1).reshape(N, 1)

    # tile the row axis; clamp tile to the (8-aligned) problem size so tiny
    # problems don't DMA mostly-empty blocks.
    tm = max(8, min(int(tile_m), _round_up(N, 8)))
    num_blocks = pl.cdiv(N, tm)
    inner = pl.cdiv(num_blocks, n_split)
    grid = (n_split, inner)

    # Clamp the row-block index; over-hanging iterations re-read the last block
    # but contribute 0 (their unclamped row indices are >= N and get masked).
    def row_block(c, i):
        return (jnp.minimum(c * inner + i, num_blocks - 1), 0)

    kernel = functools.partial(_edge_ce_kernel, n_rows=N, tile_m=tm)

    out = pl.pallas_call(
        kernel,
        out_shape=jax.ShapeDtypeStruct((n_split, 1, 1), jnp.float32),
        grid_spec=pltpu.PrefetchScalarGridSpec(
            num_scalar_prefetch=0,
            grid=grid,
            in_specs=[
                pl.BlockSpec((tm, D), row_block),
                pl.BlockSpec((tm, 1), row_block),
            ],
            out_specs=pl.BlockSpec((1, 1, 1), lambda c, i: (c, 0, 0)),
        ),
        compiler_params=pltpu.CompilerParams(
            dimension_semantics=("parallel", "arbitrary")),
    )(x, t)
    return jnp.sum(out)


def _reference(logits, target, nodes, node_pad_token=0):
    """Pure-JAX reference matching F.cross_entropy(input[mask], target[mask], 'sum')."""
    B, L, _, D = logits.shape
    node_ok = nodes != node_pad_token
    pad_mask = node_ok[:, :, None] & node_ok[:, None, :]
    x = logits.reshape(-1, D).astype(jnp.float32)
    t = target.reshape(-1).astype(jnp.int32)
    m = pad_mask.reshape(-1).astype(jnp.float32)
    lse = jax.scipy.special.logsumexp(x, axis=-1)
    tgt = jnp.take_along_axis(x, t[:, None], axis=-1)[:, 0]
    return jnp.sum((lse - tgt) * m)


if __name__ == "__main__":
    key = jax.random.PRNGKey(0)
    B, L, D = 2, 8, 32
    NODE_PAD = 0

    k1, k2, k3 = jax.random.split(key, 3)
    logits = jax.random.normal(k1, (B, L, L, D), dtype=jnp.float32)
    target = jax.random.randint(k2, (B, L, L), 0, D, dtype=jnp.int32)
    # nodes: valid tokens in [1, 10), last few positions padded with NODE_PAD
    nodes = jax.random.randint(k3, (B, L), 1, 10, dtype=jnp.int32)
    nodes = nodes.at[:, L - 2:].set(NODE_PAD)

    loss = edge_criterion(logits, target, nodes, node_pad_token=NODE_PAD)
    loss = jax.block_until_ready(loss)

    ref = _reference(logits, target, nodes, node_pad_token=NODE_PAD)
    assert jnp.allclose(loss, ref, rtol=1e-5, atol=1e-3), (loss, ref)

    print("KERNEL_OK")
</pallas_src>

<mosaic_0001>
module attributes {stable_mosaic.version = 11 : i64} {
  func.func @_edge_ce_kernel(%arg0: i32, %arg1: i32, %arg2: memref<128x32xf32, #tpu.memory_space<vmem>>, %arg3: memref<128x1xi32, #tpu.memory_space<vmem>>, %arg4: memref<1x1x1xf32, #tpu.memory_space<vmem>>) attributes {dimension_semantics = [#tpu.dimension_semantics<parallel>, #tpu.dimension_semantics<arbitrary>], iteration_bounds = array<i64: 2, 1>, scalar_prefetch = 0 : i64, scratch_operands = 0 : i64, tpu.core_type = #tpu.core_type<tc>, window_params = [{transform_indices = @transform_0, window_bounds = array<i64: 128, 32>}, {transform_indices = @transform_1, window_bounds = array<i64: 128, 1>}, {transform_indices = @transform_2, window_bounds = array<i64: 1, 1, 1>}]} {
    %c0_i32 = arith.constant 0 : i32
    %0 = arith.cmpi eq, %arg1, %c0_i32 : i32
    %1 = arith.extui %0 : i1 to i32
    %c0_i32_0 = arith.constant 0 : i32
    %2 = arith.cmpi ne, %1, %c0_i32_0 : i32
    scf.if %2 {
      %cst_17 = arith.constant 0.000000e+00 : f32
      %43 = vector.broadcast %cst_17 : f32 to vector<1x1x1xf32>
      %c0_18 = arith.constant 0 : index
      %c0_19 = arith.constant 0 : index
      %c0_20 = arith.constant 0 : index
      %44 = vector.load %arg4[%c0_18, %c0_19, %c0_20] : memref<1x1x1xf32, #tpu.memory_space<vmem>>, vector<1x1x1xf32>
      tpu.vector_store %arg4[%c0_18, %c0_19, %c0_20], %43 {strides = array<i32>} : memref<1x1x1xf32, #tpu.memory_space<vmem>>, vector<1x1x1xf32>,
    } else {
    }
    %c0 = arith.constant 0 : index
    %c0_1 = arith.constant 0 : index
    %3 = vector.load %arg2[%c0, %c0_1] : memref<128x32xf32, #tpu.memory_space<vmem>>, vector<128x32xf32>
    %c0_2 = arith.constant 0 : index
    %c0_3 = arith.constant 0 : index
    %4 = vector.load %arg3[%c0_2, %c0_3] : memref<128x1xi32, #tpu.memory_space<vmem>>, vector<128x1xi32>
    %cst = arith.constant dense<0xFF800000> : vector<128xf32>
    %5 = vector.multi_reduction <maximumf>, %3, %cst [1] : vector<128x32xf32> to vector<128xf32>
    %6 = vector.shape_cast %5 : vector<128xf32> to vector<128x1xf32>
    %7 = vector.broadcast %6 : vector<128x1xf32> to vector<128x32xf32>
    %8 = arith.subf %3, %7 : vector<128x32xf32>
    %9 = math.exp %8 : vector<128x32xf32>
    %cst_4 = arith.constant dense<0.000000e+00> : vector<128xf32>
    %10 = vector.multi_reduction <add>, %9, %cst_4 [1] : vector<128x32xf32> to vector<128xf32>
    %11 = vector.shape_cast %10 : vector<128xf32> to vector<128x1xf32>
    %12 = math.log %11 : vector<128x1xf32>
    %13 = arith.addf %6, %12 : vector<128x1xf32>
    %14 = tpu.iota {dimensions = array<i32: 1>} : vector<128x32xi32>
    %15 = vector.broadcast %4 : vector<128x1xi32> to vector<128x32xi32>
    %16 = arith.cmpi eq, %14, %15 : vector<128x32xi32>
    %cst_5 = arith.constant 0.000000e+00 : f32
    %17 = vector.broadcast %cst_5 : f32 to vector<128x32xf32>
    %18 = arith.select %16, %3, %17 : vector<128x32xi1>, vector<128x32xf32>
    %cst_6 = arith.constant dense<0.000000e+00> : vector<128xf32>
    %19 = vector.multi_reduction <add>, %18, %cst_6 [1] : vector<128x32xf32> to vector<128xf32>
    %20 = vector.shape_cast %19 : vector<128xf32> to vector<128x1xf32>
    %c1_i32 = arith.constant 1 : i32
    %21 = arith.muli %arg0, %c1_i32 : i32
    %22 = arith.addi %21, %arg1 : i32
    %c128_i32 = arith.constant 128 : i32
    %23 = arith.muli %22, %c128_i32 : i32
    %24 = tpu.iota {dimensions = array<i32: 0>} : vector<128x1xi32>
    %25 = vector.broadcast %23 : i32 to vector<128x1xi32>
    %26 = arith.addi %25, %24 : vector<128x1xi32>
    %c128_i32_7 = arith.constant 128 : i32
    %27 = vector.broadcast %c128_i32_7 : i32 to vector<128x1xi32>
    %28 = arith.cmpi slt, %26, %27 : vector<128x1xi32>
    %c0_i32_8 = arith.constant 0 : i32
    %29 = vector.broadcast %c0_i32_8 : i32 to vector<128x1xi32>
    %30 = arith.cmpi sge, %4, %29 : vector<128x1xi32>
    %31 = arith.andi %28, %30 : vector<128x1xi1>
    %32 = arith.subf %13, %20 : vector<128x1xf32>
    %cst_9 = arith.constant 0.000000e+00 : f32
    %33 = vector.broadcast %cst_9 : f32 to vector<128x1xf32>
    %34 = arith.select %31, %32, %33 : vector<128x1xi1>, vector<128x1xf32>
    %c0_10 = arith.constant 0 : index
    %c0_11 = arith.constant 0 : index
    %c0_12 = arith.constant 0 : index
    %35 = vector.load %arg4[%c0_10, %c0_11, %c0_12] : memref<1x1x1xf32, #tpu.memory_space<vmem>>, vector<1x1x1xf32>
    %36 = vector.shape_cast %34 : vector<128x1xf32> to vector<1x128x1xf32>
    %cst_13 = arith.constant dense<0.000000e+00> : vector<1xf32>
    %37 = vector.multi_reduction <add>, %36, %cst_13 [1, 2] : vector<1x128x1xf32> to vector<1xf32>
    %38 = vector.shape_cast %37 : vector<1xf32> to vector<1x1x1xf32>
    %39 = vector.extract %38[0, 0, 0] : f32 from vector<1x1x1xf32>
    %40 = vector.broadcast %39 : f32 to vector<1x1x1xf32>
    %41 = arith.addf %35, %40 : vector<1x1x1xf32>
    %c0_14 = arith.constant 0 : index
    %c0_15 = arith.constant 0 : index
    %c0_16 = arith.constant 0 : index
    %42 = vector.load %arg4[%c0_14, %c0_15, %c0_16] : memref<1x1x1xf32, #tpu.memory_space<vmem>>, vector<1x1x1xf32>
    tpu.vector_store %arg4[%c0_14, %c0_15, %c0_16], %41 {strides = array<i32>} : memref<1x1x1xf32, #tpu.memory_space<vmem>>, vector<1x1x1xf32>,
    return
  }
  func.func @transform_0(%arg0: i32, %arg1: i32) -> (i32, i32) {
    %c1_i32 = arith.constant 1 : i32
    %0 = arith.muli %arg0, %c1_i32 : i32
    %1 = arith.addi %0, %arg1 : i32
    %c0_i32 = arith.constant 0 : i32
    %2 = arith.minsi %1, %c0_i32 : i32
    %c0_i32_0 = arith.constant 0 : i32
    %c0_i32_1 = arith.constant 0 : i32
    return %2, %c0_i32_0 : i32, i32
  }
  func.func @transform_1(%arg0: i32, %arg1: i32) -> (i32, i32) {
    %c1_i32 = arith.constant 1 : i32
    %0 = arith.muli %arg0, %c1_i32 : i32
    %1 = arith.addi %0, %arg1 : i32
    %c0_i32 = arith.constant 0 : i32
    %2 = arith.minsi %1, %c0_i32 : i32
    %c0_i32_0 = arith.constant 0 : i32
    %c0_i32_1 = arith.constant 0 : i32
    return %2, %c0_i32_0 : i32, i32
  }
  func.func @transform_2(%arg0: i32, %arg1: i32) -> (i32, i32, i32) {
    %c0_i32 = arith.constant 0 : i32
    %c0_i32_0 = arith.constant 0 : i32
    %c0_i32_1 = arith.constant 0 : i32
    return %arg0, %c0_i32, %c0_i32_0 : i32, i32, i32
  }
}

</mosaic_0001>

<llo_original>
// kernel: edge_criterion.1
$region0: #{edge_criterion.1}
  #allocation0 [shape = 'u32[]', space=smem, size = 0x4, offset = 0x4, fixed_abs, tag = 'smem constant byte address 0x4 - core index']
  #allocation1 [shape = 'u32[72,128]{1,0:T(1,128)}', space=vmem, size = 0x9000, scoped, tag = 'internal scratch']
  %s0 = inlined_call_operand.vmem [shape: f32[128,32], index: 0, kind: input, shape index: {}]
  %s1 = inlined_call_operand.vmem [shape: s32[128,1], index: 1, kind: input, shape index: {}]
  %s2 = inlined_call_operand.vmem [shape: f32[2,1,1], index: 2, kind: output, shape index: {}]
  %s3 = sld [smem:[#allocation0]]
  $region45: #{edge_criterion.1} parent=0
    _
  %s5 = ssub.s32 1, %s3
  %s6 = scalar_select 0, %s5, %s3
  loop: start=0, step=1, limit=4
  $region2: #{edge_criterion.1} parent=0 // loop_pre_header
    _
  $region3: #{edge_criterion.1} parent=0 // loop_header
    %s8 = sphi 0, %s12
    %p9 = scmp.ge.s32.totalorder %s8, 4
    %s15 = sphi 0, %s27
    %s16 = sphi 0, %s23
    %s17 = sphi 0, %s15
    %s18 = sphi 0, %s16
    %s19 = sphi 0, %s17
    %s20 = sphi 0, %s18
    %s36 = sphi 0, %s38
    %s39 = sphi 0, %s36
    %s40 = sphi 0, %s39
    %s56 = sphi 0, %s40
    %s68 = sphi 0, %s70
    %s71 = sphi 0, %s68
    %s72 = sphi 0, %s71
    %s88 = sphi 0, %s72
    %s94 = sphi 0, %s96
    %s97 = sphi 0, %s94
    %s98 = sphi 0, %s97
    %s114 = sphi 0, %s98
  $region4: #{edge_criterion.1} parent=0 // loop_header_branch
    %11 = sbr.rel (%p9) target = $region8
  $region5: #{edge_criterion.1} parent=0 // loop_body
    %s13 = ssub.s32 %s8, 1
    %s14 = ssub.s32 %s8, 2
    %s21 = sadd.s32 1, %s16
    %p22 = scmp.ge.s32.totalorder %s21, 1
    %s23 = scalar_select %p22, 0, %s21
    %s24 = sadd.s32 1, %s15
    %s25 = scalar_select %p22, %s24, %s15
    %p26 = scmp.ge.s32.totalorder %s25, 2
    %s27 = scalar_select %p26, 0, %s25
    %s28 = sadd.s32 %s15, %s16
    %p29 = scmp.lt.s32.totalorder %s28, 0
    %s30 = scalar_select %p29, %s28, 0
    %s31 = sadd.s32 %s27, %s23
    %p32 = scmp.lt.s32.totalorder %s31, 0
    %s33 = scalar_select %p32, %s31, 0
    %s34 = ssub.s32 %s30, %s33
    %p35 = scmp.eq.s32.totalorder %s34, 0
    %s37 = sadd.s32 %s36, 1
    %s38 = scalar_select %p35, %s36, %s37
    %p41 = pneg %p35
    %p42 = scmp.eq.s32.totalorder %s8, 1
    %p43 = por %p41, %p42
    %p44 = scmp.ne.s32.totalorder %s36, %s39
    %p45 = scmp.eq.s32.totalorder %s8, 0
    %p46 = por %p44, %p45
    %p47 = scmp.ne.s32.totalorder %s36, %s39
    %p48 = scmp.eq.s32.totalorder %s13, 1
    %p49 = por %p47, %p48
    %p50 = scmp.ne.s32.totalorder %s39, %s40
    %p51 = scmp.eq.s32.totalorder %s13, 0
    %p52 = por %p50, %p51
    %p53 = scmp.ne.s32.totalorder %s39, %s40
    %p54 = scmp.eq.s32.totalorder %s14, 1
    %p55 = por %p53, %p54
    %p57 = scmp.ne.s32.totalorder %s40, %s56
    %p58 = scmp.eq.s32.totalorder %s14, 0
    %p59 = por %p57, %p58
    %s60 = sadd.s32 %s15, %s16
    %p61 = scmp.lt.s32.totalorder %s60, 0
    %s62 = scalar_select %p61, %s60, 0
    %s63 = sadd.s32 %s27, %s23
    %p64 = scmp.lt.s32.totalorder %s63, 0
    %s65 = scalar_select %p64, %s63, 0
    %s66 = ssub.s32 %s62, %s65
    %p67 = scmp.eq.s32.totalorder %s66, 0
    %s69 = sadd.s32 %s68, 1
    %s70 = scalar_select %p67, %s68, %s69
    %p73 = pneg %p67
    %p74 = scmp.eq.s32.totalorder %s8, 1
    %p75 = por %p73, %p74
    %p76 = scmp.ne.s32.totalorder %s68, %s71
    %p77 = scmp.eq.s32.totalorder %s8, 0
    %p78 = por %p76, %p77
    %p79 = scmp.ne.s32.totalorder %s68, %s71
    %p80 = scmp.eq.s32.totalorder %s13, 1
    %p81 = por %p79, %p80
    %p82 = scmp.ne.s32.totalorder %s71, %s72
    %p83 = scmp.eq.s32.totalorder %s13, 0
    %p84 = por %p82, %p83
    %p85 = scmp.ne.s32.totalorder %s71, %s72
    %p86 = scmp.eq.s32.totalorder %s14, 1
    %p87 = por %p85, %p86
    %p89 = scmp.ne.s32.totalorder %s72, %s88
    %p90 = scmp.eq.s32.totalorder %s14, 0
    %p91 = por %p89, %p90
    %s92 = ssub.s32 %s15, %s27
    %p93 = scmp.eq.s32.totalorder %s92, 0
    %s95 = sadd.s32 %s94, 1
    %s96 = scalar_select %p93, %s94, %s95
    %p99 = pneg %p93
    %p100 = scmp.eq.s32.totalorder %s8, 1
    %p101 = por %p99, %p100
    %p102 = scmp.ne.s32.totalorder %s94, %s97
    %p103 = scmp.eq.s32.totalorder %s8, 0
    %p104 = por %p102, %p103
    %p105 = scmp.ne.s32.totalorder %s94, %s97
    %p106 = scmp.eq.s32.totalorder %s13, 1
    %p107 = por %p105, %p106
    %p108 = scmp.ne.s32.totalorder %s97, %s98
    %p109 = scmp.eq.s32.totalorder %s13, 0
    %p110 = por %p108, %p109
    %p111 = scmp.ne.s32.totalorder %s97, %s98
    %p112 = scmp.eq.s32.totalorder %s14, 1
    %p113 = por %p111, %p112
    %p115 = scmp.ne.s32.totalorder %s98, %s114
    %p116 = scmp.eq.s32.totalorder %s14, 0
    %p117 = por %p115, %p116
    %p118 = scmp.le.s32.totalorder 1, %s8
    %p119 = scmp.lt.s32.totalorder %s8, 3
    %p120 = pnand %p118, %p119
    %p121 = pneg %p120
    // Predicated region
    $region9: #{edge_criterion.1} parent=5 // pred_check
      _
    $region10: #{edge_criterion.1} parent=5 // pred_check_branch
      %123 = sbr.rel (%p120) target = $region12
    $region11: #{edge_criterion.1} parent=5 // pred_region
      %s124 = ssub.s32 %s8, 1
    $region12: #{edge_criterion.1} parent=5 // pred_fallthru
      _
    %p125 = scmp.lt.s32.totalorder %s8, 2
    // Predicated region
    $region13: #{edge_criterion.1} parent=5 // pred_check
      %p126 = pneg %p125
    $region14: #{edge_criterion.1} parent=5 // pred_check_branch
      %128 = sbr.rel (%p126) target = $region16
    $region15: #{edge_criterion.1} parent=5 // pred_region
      // Predicated region
      $region17: #{edge_criterion.1} parent=15 // pred_check
        %p129 = pneg %p46
      $region18: #{edge_criterion.1} parent=15 // pred_check_branch
        %131 = sbr.rel (%p129) target = $region20
      $region19: #{edge_criterion.1} parent=15 // pred_region
        %s132 = sadd.s32 %s15, %s16
        %p133 = scmp.lt.s32.totalorder %s132, 0
        %s134 = scalar_select %p133, %s132, 0
        %s135 = smul.u32 16, %s134
        %p136 = scmp.lt.s32.totalorder %s135, 15
        %s137 = scalar_select %p136, %s135, 15
        %s138 = smul.addr %s137, 8
        %s139 = scalar_lea.vmem %s0, %s138
        %s140 = sadd.s32 %s15, %s16
        %p141 = scmp.lt.s32.totalorder %s140, 0
        %s142 = scalar_select %p141, %s140, 0
        %s143 = smul.u32 16, %s142
      $region20: #{edge_criterion.1} parent=15 // pred_fallthru
        _
      // Predicated region
      $region21: #{edge_criterion.1} parent=15 // pred_check
        %p144 = pneg %p78
      $region22: #{edge_criterion.1} parent=15 // pred_check_branch
        %146 = sbr.rel (%p144) target = $region24
      $region23: #{edge_criterion.1} parent=15 // pred_region
        %s147 = sadd.s32 %s15, %s16
        %p148 = scmp.lt.s32.totalorder %s147, 0
        %s149 = scalar_select %p148, %s147, 0
        %s150 = smul.u32 16, %s149
        %p151 = scmp.lt.s32.totalorder %s150, 15
        %s152 = scalar_select %p151, %s150, 15
        %s153 = smul.addr %s152, 8
        %s154 = scalar_lea.vmem %s1, %s153
        %s155 = sadd.s32 %s15, %s16
        %p156 = scmp.lt.s32.totalorder %s155, 0
        %s157 = scalar_select %p156, %s155, 0
        %s158 = smul.u32 16, %s157
      $region24: #{edge_criterion.1} parent=15 // pred_fallthru
        _
    $region16: #{edge_criterion.1} parent=5 // pred_fallthru
      _
    %p159 = scmp.le.s32.totalorder 1, %s8
    %p160 = scmp.lt.s32.totalorder %s8, 3
    %p161 = pnand %p159, %p160
    %p162 = pneg %p161
    // Predicated region
    $region25: #{edge_criterion.1} parent=5 // pred_check
      _
    $region26: #{edge_criterion.1} parent=5 // pred_check_branch
      %164 = sbr.rel (%p161) target = $region28
    $region27: #{edge_criterion.1} parent=5 // pred_region
      %s165 = ssub.s32 %s8, 1
      %s166 = sadd.s32 %s17, %s18
      %p167 = scmp.lt.s32.totalorder %s166, 0
      %s168 = scalar_select %p167, %s166, 0
      %s169 = smul.u32 16, %s168
      %p170 = scmp.lt.s32.totalorder %s169, 15
      %s171 = scalar_select %p170, %s169, 15
      %s172 = smul.addr %s171, 8
      %s173 = scalar_lea.vmem %s0, %s172
      %p174 = pneg %p52
      %p175 = pneg %p49
      %s176 = sadd.s32 %s17, %s18
      %p177 = scmp.lt.s32.totalorder %s176, 0
      %s178 = scalar_select %p177, %s176, 0
      %s179 = smul.u32 16, %s178
      %p180 = scmp.lt.s32.totalorder %s179, 15
      %s181 = scalar_select %p180, %s179, 15
      %s182 = smul.addr %s181, 8
      %s183 = scalar_lea.vmem %s1, %s182
      %p184 = pneg %p84
      %p185 = pneg %p81
      %p186 = pneg %p110
      %p187 = pneg %p107
      %p188 = scmp.lt.s32.totalorder %s17, 1
      %s189 = scalar_select %p188, %s17, 1
      %s190 = scalar_lea.vmem %s2, %s189
      %s191 = sadd.s32 %s17, %s18
      %p192 = scmp.lt.s32.totalorder %s191, 0
      %s193 = scalar_select %p192, %s191, 0
      %s194 = smul.u32 16, %s193
      %p195 = scmp.lt.s32.totalorder %s194, 15
      %s196 = scalar_select %p195, %s194, 15
      %s197 = smul.addr %s196, 8
      %s198 = scalar_lea.vmem %s0, %s197
      %s199 = sadd.s32 %s17, %s18
      %p200 = scmp.lt.s32.totalorder %s199, 0
      %s201 = scalar_select %p200, %s199, 0
      %s202 = smul.u32 16, %s201
      %s203 = sadd.s32 %s17, %s18
      %p204 = scmp.lt.s32.totalorder %s203, 0
      %s205 = scalar_select %p204, %s203, 0
      %s206 = smul.u32 16, %s205
      %p207 = scmp.lt.s32.totalorder %s206, 15
      %s208 = scalar_select %p207, %s206, 15
      %s209 = smul.addr %s208, 8
      %s210 = scalar_lea.vmem %s1, %s209
      %s211 = sadd.s32 %s17, %s18
      %p212 = scmp.lt.s32.totalorder %s211, 0
      %s213 = scalar_select %p212, %s211, 0
      %s214 = smul.u32 16, %s213
      %p215 = scmp.lt.s32.totalorder %s17, 1
      %s216 = scalar_select %p215, %s17, 1
      %s217 = scalar_lea.vmem %s2, %s216
      %p218 = scmp.eq.s32.totalorder %s18, 0
      // Predicated region
      $region29: #{edge_criterion.1} parent=27 // pred_check
        %p219 = pneg %p218
      $region30: #{edge_criterion.1} parent=27 // pred_check_branch
        %221 = sbr.rel (%p219) target = $region32
      $region31: #{edge_criterion.1} parent=27 // pred_region
        %vm222 = vcmask 0
        %223 = vst.msk [vmem:[%s217] sm:$0x1] %vm222, 0.0
      $region32: #{edge_criterion.1} parent=27 // pred_fallthru
        _
      %v224 = vld [vmem:[%s198] sm:$0xff]
      %v225 = vld [vmem:[%s198 + $0x8] sm:$0xff]
      %v226 = vld [vmem:[%s198 + $0x10] sm:$0xff]
      %v227 = vld [vmem:[%s198 + $0x18] sm:$0xff]
      %v228 = vld [vmem:[%s198 + $0x20] sm:$0xff]
      %v229 = vld [vmem:[%s198 + $0x28] sm:$0xff]
      %v230 = vld [vmem:[%s198 + $0x30] sm:$0xff]
      %v231 = vld [vmem:[%s198 + $0x38] sm:$0xff]
      %v232 = vld [vmem:[%s198 + $0x40] sm:$0xff]
      %v233 = vld [vmem:[%s198 + $0x48] sm:$0xff]
      %v234 = vld [vmem:[%s198 + $0x50] sm:$0xff]
      %v235 = vld [vmem:[%s198 + $0x58] sm:$0xff]
      %v236 = vld [vmem:[%s198 + $0x60] sm:$0xff]
      %v237 = vld [vmem:[%s198 + $0x68] sm:$0xff]
      %v238 = vld [vmem:[%s198 + $0x70] sm:$0xff]
      %v239 = vld [vmem:[%s198 + $0x78] sm:$0xff]
      %v240 = vld [vmem:[%s210] sm:$0xff]
      %v241 = vld [vmem:[%s210 + $0x8] sm:$0xff]
      %v242 = vld [vmem:[%s210 + $0x10] sm:$0xff]
      %v243 = vld [vmem:[%s210 + $0x18] sm:$0xff]
      %v244 = vld [vmem:[%s210 + $0x20] sm:$0xff]
      %v245 = vld [vmem:[%s210 + $0x28] sm:$0xff]
      %v246 = vld [vmem:[%s210 + $0x30] sm:$0xff]
      %v247 = vld [vmem:[%s210 + $0x38] sm:$0xff]
      %v248 = vld [vmem:[%s210 + $0x40] sm:$0xff]
      %v249 = vld [vmem:[%s210 + $0x48] sm:$0xff]
      %v250 = vld [vmem:[%s210 + $0x50] sm:$0xff]
      %v251 = vld [vmem:[%s210 + $0x58] sm:$0xff]
      %v252 = vld [vmem:[%s210 + $0x60] sm:$0xff]
      %v253 = vld [vmem:[%s210 + $0x68] sm:$0xff]
      %v254 = vld [vmem:[%s210 + $0x70] sm:$0xff]
      %v255 = vld [vmem:[%s210 + $0x78] sm:$0xff]
      %vm256 = vcmask 261120
      %v257 = vsel %vm256, %v224, -inf
      %258 = vmax.xlane.f32.xlu0 %v257
      %v259 = vpop.xlane.xlu0 %258
      %v260 = vsel %vm256, %v225, -inf
      %261 = vmax.xlane.f32.xlu0 %v260
      %v262 = vpop.xlane.xlu0 %261
      %v263 = vsel %vm256, %v226, -inf
      %264 = vmax.xlane.f32.xlu0 %v263
      %v265 = vpop.xlane.xlu0 %264
      %v266 = vsel %vm256, %v227, -inf
      %267 = vmax.xlane.f32.xlu0 %v266
      %v268 = vpop.xlane.xlu0 %267
      %v269 = vsel %vm256, %v228, -inf
      %270 = vmax.xlane.f32.xlu0 %v269
      %v271 = vpop.xlane.xlu0 %270
      %v272 = vsel %vm256, %v229, -inf
      %273 = vmax.xlane.f32.xlu0 %v272
      %v274 = vpop.xlane.xlu0 %273
      %v275 = vsel %vm256, %v230, -inf
      %276 = vmax.xlane.f32.xlu0 %v275
      %v277 = vpop.xlane.xlu0 %276
      %v278 = vsel %vm256, %v231, -inf
      %279 = vmax.xlane.f32.xlu0 %v278
      %v280 = vpop.xlane.xlu0 %279
      %v281 = vsel %vm256, %v232, -inf
      %282 = vmax.xlane.f32.xlu0 %v281
      %v283 = vpop.xlane.xlu0 %282
      %v284 = vsel %vm256, %v233, -inf
      %285 = vmax.xlane.f32.xlu0 %v284
      %v286 = vpop.xlane.xlu0 %285
      %v287 = vsel %vm256, %v234, -inf
      %288 = vmax.xlane.f32.xlu0 %v287
      %v289 = vpop.xlane.xlu0 %288
      %v290 = vsel %vm256, %v235, -inf
      %291 = vmax.xlane.f32.xlu0 %v290
      %v292 = vpop.xlane.xlu0 %291
      %v293 = vsel %vm256, %v236, -inf
      %294 = vmax.xlane.f32.xlu0 %v293
      %v295 = vpop.xlane.xlu0 %294
      %v296 = vsel %vm256, %v237, -inf
      %297 = vmax.xlane.f32.xlu0 %v296
      %v298 = vpop.xlane.xlu0 %297
      %v299 = vsel %vm256, %v238, -inf
      %300 = vmax.xlane.f32.xlu0 %v299
      %v301 = vpop.xlane.xlu0 %300
      %v302 = vsel %vm256, %v239, -inf
      %303 = vmax.xlane.f32.xlu0 %v302
      %v304 = vpop.xlane.xlu0 %303
      %v305 = vsub.f32 %v224, %v259
      %v306 = vsub.f32 %v225, %v262
      %v307 = vsub.f32 %v226, %v265
      %v308 = vsub.f32 %v227, %v268
      %v309 = vsub.f32 %v228, %v271
      %v310 = vsub.f32 %v229, %v274
      %v311 = vsub.f32 %v230, %v277
      %v312 = vsub.f32 %v231, %v280
      %v313 = vsub.f32 %v232, %v283
      %v314 = vsub.f32 %v233, %v286
      %v315 = vsub.f32 %v234, %v289
      %v316 = vsub.f32 %v235, %v292
      %v317 = vsub.f32 %v236, %v295
      %v318 = vsub.f32 %v237, %v298
      %v319 = vsub.f32 %v238, %v301
      %v320 = vsub.f32 %v239, %v304
      %v321 = vmul.f32 %v305, 1.442695
      %v322 = vpow.pop %v321
      %v323 = vmul.f32 %v306, 1.442695
      %v324 = vpow.pop %v323
      %v325 = vmul.f32 %v307, 1.442695
      %v326 = vpow.pop %v325
      %v327 = vmul.f32 %v308, 1.442695
      %v328 = vpow.pop %v327
      %v329 = vmul.f32 %v309, 1.442695
      %v330 = vpow.pop %v329
      %v331 = vmul.f32 %v310, 1.442695
      %v332 = vpow.pop %v331
      %v333 = vmul.f32 %v311, 1.442695
      %v334 = vpow.pop %v333
      %v335 = vmul.f32 %v312, 1.442695
      %v336 = vpow.pop %v335
      %v337 = vmul.f32 %v313, 1.442695
      %v338 = vpow.pop %v337
      %v339 = vmul.f32 %v314, 1.442695
      %v340 = vpow.pop %v339
      %v341 = vmul.f32 %v315, 1.442695
      %v342 = vpow.pop %v341
      %v343 = vmul.f32 %v316, 1.442695
      %v344 = vpow.pop %v343
      %v345 = vmul.f32 %v317, 1.442695
      %v346 = vpow.pop %v345
      %v347 = vmul.f32 %v318, 1.442695
      %v348 = vpow.pop %v347
      %v349 = vmul.f32 %v319, 1.442695
      %v350 = vpow.pop %v349
      %v351 = vmul.f32 %v320, 1.442695
      %v352 = vpow.pop %v351
      %v353 = vsel %vm256, %v322, 0.0
      %354 = vadd.xlane.f32.xlu0 %v353
      %v355 = vpop.xlane.xlu0 %354
      %v356 = vsel %vm256, %v324, 0.0
      %357 = vadd.xlane.f32.xlu0 %v356
      %v358 = vpop.xlane.xlu0 %357
      %v359 = vsel %vm256, %v326, 0.0
      %360 = vadd.xlane.f32.xlu0 %v359
      %v361 = vpop.xlane.xlu0 %360
      %v362 = vsel %vm256, %v328, 0.0
      %363 = vadd.xlane.f32.xlu0 %v362
      %v364 = vpop.xlane.xlu0 %363
      %v365 = vsel %vm256, %v330, 0.0
      %366 = vadd.xlane.f32.xlu0 %v365
      %v367 = vpop.xlane.xlu0 %366
      %v368 = vsel %vm256, %v332, 0.0
      %369 = vadd.xlane.f32.xlu0 %v368
      %v370 = vpop.xlane.xlu0 %369
      %v371 = vsel %vm256, %v334, 0.0
      %372 = vadd.xlane.f32.xlu0 %v371
      %v373 = vpop.xlane.xlu0 %372
      %v374 = vsel %vm256, %v336, 0.0
      %375 = vadd.xlane.f32.xlu0 %v374
      %v376 = vpop.xlane.xlu0 %375
      %v377 = vsel %vm256, %v338, 0.0
      %378 = vadd.xlane.f32.xlu0 %v377
      %v379 = vpop.xlane.xlu0 %378
      %v380 = vsel %vm256, %v340, 0.0
      %381 = vadd.xlane.f32.xlu0 %v380
      %v382 = vpop.xlane.xlu0 %381
      %v383 = vsel %vm256, %v342, 0.0
      %384 = vadd.xlane.f32.xlu0 %v383
      %v385 = vpop.xlane.xlu0 %384
      %v386 = vsel %vm256, %v344, 0.0
      %387 = vadd.xlane.f32.xlu0 %v386
      %v388 = vpop.xlane.xlu0 %387
      %v389 = vsel %vm256, %v346, 0.0
      %390 = vadd.xlane.f32.xlu0 %v389
      %v391 = vpop.xlane.xlu0 %390
      %v392 = vsel %vm256, %v348, 0.0
      %393 = vadd.xlane.f32.xlu0 %v392
      %v394 = vpop.xlane.xlu0 %393
      %v395 = vsel %vm256, %v350, 0.0
      %396 = vadd.xlane.f32.xlu0 %v395
      %v397 = vpop.xlane.xlu0 %396
      %v398 = vsel %vm256, %v352, 0.0
      %399 = vadd.xlane.f32.xlu0 %v398
      %v400 = vpop.xlane.xlu0 %399
      %v401 = vlog2.pop %v355
      %v402 = vmul.f32 %v401, 0.6931472
      %v403 = vlog2.pop %v358
      %v404 = vmul.f32 %v403, 0.6931472
      %v405 = vlog2.pop %v361
      %v406 = vmul.f32 %v405, 0.6931472
      %v407 = vlog2.pop %v364
      %v408 = vmul.f32 %v407, 0.6931472
      %v409 = vlog2.pop %v367
      %v410 = vmul.f32 %v409, 0.6931472
      %v411 = vlog2.pop %v370
      %v412 = vmul.f32 %v411, 0.6931472
      %v413 = vlog2.pop %v373
      %v414 = vmul.f32 %v413, 0.6931472
      %v415 = vlog2.pop %v376
      %v416 = vmul.f32 %v415, 0.6931472
      %v417 = vlog2.pop %v379
      %v418 = vmul.f32 %v417, 0.6931472
      %v419 = vlog2.pop %v382
      %v420 = vmul.f32 %v419, 0.6931472
      %v421 = vlog2.pop %v385
      %v422 = vmul.f32 %v421, 0.6931472
      %v423 = vlog2.pop %v388
      %v424 = vmul.f32 %v423, 0.6931472
      %v425 = vlog2.pop %v391
      %v426 = vmul.f32 %v425, 0.6931472
      %v427 = vlog2.pop %v394
      %v428 = vmul.f32 %v427, 0.6931472
      %v429 = vlog2.pop %v397
      %v430 = vmul.f32 %v429, 0.6931472
      %v431 = vlog2.pop %v400
      %v432 = vmul.f32 %v431, 0.6931472
      %v433 = vadd.f32 %v259, %v402
      %v434 = vadd.f32 %v262, %v404
      %v435 = vadd.f32 %v265, %v406
      %v436 = vadd.f32 %v268, %v408
      %v437 = vadd.f32 %v271, %v410
      %v438 = vadd.f32 %v274, %v412
      %v439 = vadd.f32 %v277, %v414
      %v440 = vadd.f32 %v280, %v416
      %v441 = vadd.f32 %v283, %v418
      %v442 = vadd.f32 %v286, %v420
      %v443 = vadd.f32 %v289, %v422
      %v444 = vadd.f32 %v292, %v424
      %v445 = vadd.f32 %v295, %v426
      %v446 = vadd.f32 %v298, %v428
      %v447 = vadd.f32 %v301, %v430
      %v448 = vadd.f32 %v304, %v432
      %v449 = vlaneseq
      %v450 = vand.u32 %v449, 127
      %451 = vset.pattern.permute.xlu0 0
      %452 = vperm.xlu0 %451, %v240
      %v453 = vpop.permute.xlu0 %452
      %454 = vset.pattern.permute.xlu0 0
      %455 = vperm.xlu0 %454, %v241
      %v456 = vpop.permute.xlu0 %455
      %457 = vset.pattern.permute.xlu0 0
      %458 = vperm.xlu0 %457, %v242
      %v459 = vpop.permute.xlu0 %458
      %460 = vset.pattern.permute.xlu0 0
      %461 = vperm.xlu0 %460, %v243
      %v462 = vpop.permute.xlu0 %461
      %463 = vset.pattern.permute.xlu0 0
      %464 = vperm.xlu0 %463, %v244
      %v465 = vpop.permute.xlu0 %464
      %466 = vset.pattern.permute.xlu0 0
      %467 = vperm.xlu0 %466, %v245
      %v468 = vpop.permute.xlu0 %467
      %469 = vset.pattern.permute.xlu0 0
      %470 = vperm.xlu0 %469, %v246
      %v471 = vpop.permute.xlu0 %470
      %472 = vset.pattern.permute.xlu0 0
      %473 = vperm.xlu0 %472, %v247
      %v474 = vpop.permute.xlu0 %473
      %475 = vset.pattern.permute.xlu0 0
      %476 = vperm.xlu0 %475, %v248
      %v477 = vpop.permute.xlu0 %476
      %478 = vset.pattern.permute.xlu0 0
      %479 = vperm.xlu0 %478, %v249
      %v480 = vpop.permute.xlu0 %479
      %481 = vset.pattern.permute.xlu0 0
      %482 = vperm.xlu0 %481, %v250
      %v483 = vpop.permute.xlu0 %482
      %484 = vset.pattern.permute.xlu0 0
      %485 = vperm.xlu0 %484, %v251
      %v486 = vpop.permute.xlu0 %485
      %487 = vset.pattern.permute.xlu0 0
      %488 = vperm.xlu0 %487, %v252
      %v489 = vpop.permute.xlu0 %488
      %490 = vset.pattern.permute.xlu0 0
      %491 = vperm.xlu0 %490, %v253
      %v492 = vpop.permute.xlu0 %491
      %493 = vset.pattern.permute.xlu0 0
      %494 = vperm.xlu0 %493, %v254
      %v495 = vpop.permute.xlu0 %494
      %496 = vset.pattern.permute.xlu0 0
      %497 = vperm.xlu0 %496, %v255
      %v498 = vpop.permute.xlu0 %497
      %vm499 = vcmp.eq.s32.totalorder %v450, %v453
      %vm500 = vcmp.eq.s32.totalorder %v450, %v456
      %vm501 = vcmp.eq.s32.totalorder %v450, %v459
      %vm502 = vcmp.eq.s32.totalorder %v450, %v462
      %vm503 = vcmp.eq.s32.totalorder %v450, %v465
      %vm504 = vcmp.eq.s32.totalorder %v450, %v468
      %vm505 = vcmp.eq.s32.totalorder %v450, %v471
      %vm506 = vcmp.eq.s32.totalorder %v450, %v474
      %vm507 = vcmp.eq.s32.totalorder %v450, %v477
      %vm508 = vcmp.eq.s32.totalorder %v450, %v480
      %vm509 = vcmp.eq.s32.totalorder %v450, %v483
      %vm510 = vcmp.eq.s32.totalorder %v450, %v486
      %vm511 = vcmp.eq.s32.totalorder %v450, %v489
      %vm512 = vcmp.eq.s32.totalorder %v450, %v492
      %vm513 = vcmp.eq.s32.totalorder %v450, %v495
      %vm514 = vcmp.eq.s32.totalorder %v450, %v498
      %v515 = vsel %vm499, %v224, 0.0
      %v516 = vsel %vm500, %v225, 0.0
      %v517 = vsel %vm501, %v226, 0.0
      %v518 = vsel %vm502, %v227, 0.0
      %v519 = vsel %vm503, %v228, 0.0
      %v520 = vsel %vm504, %v229, 0.0
      %v521 = vsel %vm505, %v230, 0.0
      %v522 = vsel %vm506, %v231, 0.0
      %v523 = vsel %vm507, %v232, 0.0
      %v524 = vsel %vm508, %v233, 0.0
      %v525 = vsel %vm509, %v234, 0.0
      %v526 = vsel %vm510, %v235, 0.0
      %v527 = vsel %vm511, %v236, 0.0
      %v528 = vsel %vm512, %v237, 0.0
      %v529 = vsel %vm513, %v238, 0.0
      %v530 = vsel %vm514, %v239, 0.0
      %v531 = vsel %vm256, %v515, 0.0
      %532 = vadd.xlane.f32.xlu0 %v531
      %v533 = vpop.xlane.xlu0 %532
      %v534 = vsel %vm256, %v516, 0.0
      %535 = vadd.xlane.f32.xlu0 %v534
      %v536 = vpop.xlane.xlu0 %535
      %v537 = vsel %vm256, %v517, 0.0
      %538 = vadd.xlane.f32.xlu0 %v537
      %v539 = vpop.xlane.xlu0 %538
      %v540 = vsel %vm256, %v518, 0.0
      %541 = vadd.xlane.f32.xlu0 %v540
      %v542 = vpop.xlane.xlu0 %541
      %v543 = vsel %vm256, %v519, 0.0
      %544 = vadd.xlane.f32.xlu0 %v543
      %v545 = vpop.xlane.xlu0 %544
      %v546 = vsel %vm256, %v520, 0.0
      %547 = vadd.xlane.f32.xlu0 %v546
      %v548 = vpop.xlane.xlu0 %547
      %v549 = vsel %vm256, %v521, 0.0
      %550 = vadd.xlane.f32.xlu0 %v549
      %v551 = vpop.xlane.xlu0 %550
      %v552 = vsel %vm256, %v522, 0.0
      %553 = vadd.xlane.f32.xlu0 %v552
      %v554 = vpop.xlane.xlu0 %553
      %v555 = vsel %vm256, %v523, 0.0
      %556 = vadd.xlane.f32.xlu0 %v555
      %v557 = vpop.xlane.xlu0 %556
      %v558 = vsel %vm256, %v524, 0.0
      %559 = vadd.xlane.f32.xlu0 %v558
      %v560 = vpop.xlane.xlu0 %559
      %v561 = vsel %vm256, %v525, 0.0
      %562 = vadd.xlane.f32.xlu0 %v561
      %v563 = vpop.xlane.xlu0 %562
      %v564 = vsel %vm256, %v526, 0.0
      %565 = vadd.xlane.f32.xlu0 %v564
      %v566 = vpop.xlane.xlu0 %565
      %v567 = vsel %vm256, %v527, 0.0
      %568 = vadd.xlane.f32.xlu0 %v567
      %v569 = vpop.xlane.xlu0 %568
      %v570 = vsel %vm256, %v528, 0.0
      %571 = vadd.xlane.f32.xlu0 %v570
      %v572 = vpop.xlane.xlu0 %571
      %v573 = vsel %vm256, %v529, 0.0
      %574 = vadd.xlane.f32.xlu0 %v573
      %v575 = vpop.xlane.xlu0 %574
      %v576 = vsel %vm256, %v530, 0.0
      %577 = vadd.xlane.f32.xlu0 %v576
      %v578 = vpop.xlane.xlu0 %577
      %s579 = sadd.s32 %s17, %s18
      %s580 = smul.u32 %s579, 128
      %v581 = vlaneseq
      %v582 = vshrl.u32 %v581, 7
      %v583 = vadd.s32 %v582, 8
      %v584 = vadd.s32 %v582, 16
      %v585 = vadd.s32 %v582, 24
      %v586 = vadd.s32 %v582, 32
      %v587 = vadd.s32 %v582, 40
      %v588 = vadd.s32 %v582, 48
      %v589 = vadd.s32 %v582, 56
      %v590 = vadd.s32 %v582, 64
      %v591 = vadd.s32 %v582, 72
      %v592 = vadd.s32 %v582, 80
      %v593 = vadd.s32 %v582, 88
      %v594 = vadd.s32 %v582, 96
      %v595 = vadd.s32 %v582, 104
      %v596 = vadd.s32 %v582, 112
      %v597 = vadd.s32 %v582, 120
      %v598 = vstv %s580
      %v599 = vadd.s32 %v598, %v582
      %v600 = vadd.s32 %v598, %v583
      %v601 = vadd.s32 %v598, %v584
      %v602 = vadd.s32 %v598, %v585
      %v603 = vadd.s32 %v598, %v586
      %v604 = vadd.s32 %v598, %v587
      %v605 = vadd.s32 %v598, %v588
      %v606 = vadd.s32 %v598, %v589
      %v607 = vadd.s32 %v598, %v590
      %v608 = vadd.s32 %v598, %v591
      %v609 = vadd.s32 %v598, %v592
      %v610 = vadd.s32 %v598, %v593
      %v611 = vadd.s32 %v598, %v594
      %v612 = vadd.s32 %v598, %v595
      %v613 = vadd.s32 %v598, %v596
      %v614 = vadd.s32 %v598, %v597
      %vm615 = vcmp.lt.s32.totalorder %v599, 128
      %vm616 = vcmp.lt.s32.totalorder %v600, 128
      %vm617 = vcmp.lt.s32.totalorder %v601, 128
      %vm618 = vcmp.lt.s32.totalorder %v602, 128
      %vm619 = vcmp.lt.s32.totalorder %v603, 128
      %vm620 = vcmp.lt.s32.totalorder %v604, 128
      %vm621 = vcmp.lt.s32.totalorder %v605, 128
      %vm622 = vcmp.lt.s32.totalorder %v606, 128
      %vm623 = vcmp.lt.s32.totalorder %v607, 128
      %vm624 = vcmp.lt.s32.totalorder %v608, 128
      %vm625 = vcmp.lt.s32.totalorder %v609, 128
      %vm626 = vcmp.lt.s32.totalorder %v610, 128
      %vm627 = vcmp.lt.s32.totalorder %v611, 128
      %vm628 = vcmp.lt.s32.totalorder %v612, 128
      %vm629 = vcmp.lt.s32.totalorder %v613, 128
      %vm630 = vcmp.lt.s32.totalorder %v614, 128
      %vm631 = vcmp.ge.s32.totalorder %v240, 0
      %vm632 = vcmp.ge.s32.totalorder %v241, 0
      %vm633 = vcmp.ge.s32.totalorder %v242, 0
      %vm634 = vcmp.ge.s32.totalorder %v243, 0
      %vm635 = vcmp.ge.s32.totalorder %v244, 0
      %vm636 = vcmp.ge.s32.totalorder %v245, 0
      %vm637 = vcmp.ge.s32.totalorder %v246, 0
      %vm638 = vcmp.ge.s32.totalorder %v247, 0
      %vm639 = vcmp.ge.s32.totalorder %v248, 0
      %vm640 = vcmp.ge.s32.totalorder %v249, 0
      %vm641 = vcmp.ge.s32.totalorder %v250, 0
      %vm642 = vcmp.ge.s32.totalorder %v251, 0
      %vm643 = vcmp.ge.s32.totalorder %v252, 0
      %vm644 = vcmp.ge.s32.totalorder %v253, 0
      %vm645 = vcmp.ge.s32.totalorder %v254, 0
      %vm646 = vcmp.ge.s32.totalorder %v255, 0
      %vm647 = vmand %vm615, %vm631
      %vm648 = vmand %vm616, %vm632
      %vm649 = vmand %vm617, %vm633
      %vm650 = vmand %vm618, %vm634
      %vm651 = vmand %vm619, %vm635
      %vm652 = vmand %vm620, %vm636
      %vm653 = vmand %vm621, %vm637
      %vm654 = vmand %vm622, %vm638
      %vm655 = vmand %vm623, %vm639
      %vm656 = vmand %vm624, %vm640
      %vm657 = vmand %vm625, %vm641
      %vm658 = vmand %vm626, %vm642
      %vm659 = vmand %vm627, %vm643
      %vm660 = vmand %vm628, %vm644
      %vm661 = vmand %vm629, %vm645
      %vm662 = vmand %vm630, %vm646
      %v663 = vsub.f32 %v433, %v533
      %v664 = vsub.f32 %v434, %v536
      %v665 = vsub.f32 %v435, %v539
      %v666 = vsub.f32 %v436, %v542
      %v667 = vsub.f32 %v437, %v545
      %v668 = vsub.f32 %v438, %v548
      %v669 = vsub.f32 %v439, %v551
      %v670 = vsub.f32 %v440, %v554
      %v671 = vsub.f32 %v441, %v557
      %v672 = vsub.f32 %v442, %v560
      %v673 = vsub.f32 %v443, %v563
      %v674 = vsub.f32 %v444, %v566
      %v675 = vsub.f32 %v445, %v569
      %v676 = vsub.f32 %v446, %v572
      %v677 = vsub.f32 %v447, %v575
      %v678 = vsub.f32 %v448, %v578
      %v679 = vsel %vm647, %v663, 0.0
      %v680 = vsel %vm648, %v664, 0.0
      %v681 = vsel %vm649, %v665, 0.0
      %v682 = vsel %vm650, %v666, 0.0
      %v683 = vsel %vm651, %v667, 0.0
      %v684 = vsel %vm652, %v668, 0.0
      %v685 = vsel %vm653, %v669, 0.0
      %v686 = vsel %vm654, %v670, 0.0
      %v687 = vsel %vm655, %v671, 0.0
      %v688 = vsel %vm656, %v672, 0.0
      %v689 = vsel %vm657, %v673, 0.0
      %v690 = vsel %vm658, %v674, 0.0
      %v691 = vsel %vm659, %v675, 0.0
      %v692 = vsel %vm660, %v676, 0.0
      %v693 = vsel %vm661, %v677, 0.0
      %v694 = vsel %vm662, %v678, 0.0
      %v695 = vld [vmem:[%s217] sm:$0x1]
      %vm696 = vcmask 7168
      %v697 = vsel %vm696, %v679, 0.0
      %v698 = vsel %vm696, %v680, 0.0
      %v699 = vadd.f32 %v697, %v698
      %v700 = vsel %vm696, %v681, 0.0
      %v701 = vadd.f32 %v699, %v700
      %v702 = vsel %vm696, %v682, 0.0
      %v703 = vadd.f32 %v701, %v702
      %v704 = vsel %vm696, %v683, 0.0
      %v705 = vadd.f32 %v703, %v704
      %v706 = vsel %vm696, %v684, 0.0
      %v707 = vadd.f32 %v705, %v706
      %v708 = vsel %vm696, %v685, 0.0
      %v709 = vadd.f32 %v707, %v708
      %v710 = vsel %vm696, %v686, 0.0
      %v711 = vadd.f32 %v709, %v710
      %v712 = vsel %vm696, %v687, 0.0
      %v713 = vadd.f32 %v711, %v712
      %v714 = vsel %vm696, %v688, 0.0
      %v715 = vadd.f32 %v713, %v714
      %v716 = vsel %vm696, %v689, 0.0
      %v717 = vadd.f32 %v715, %v716
      %v718 = vsel %vm696, %v690, 0.0
      %v719 = vadd.f32 %v717, %v718
      %v720 = vsel %vm696, %v691, 0.0
      %v721 = vadd.f32 %v719, %v720
      %v722 = vsel %vm696, %v692, 0.0
      %v723 = vadd.f32 %v721, %v722
      %v724 = vsel %vm696, %v693, 0.0
      %v725 = vadd.f32 %v723, %v724
      %v726 = vsel %vm696, %v694, 0.0
      %v727 = vadd.f32 %v725, %v726
      %728 = vadd.xlane.f32.xlu0 %v727
      %v729 = vpop.xlane.xlu0 %728
      %v730 = vrot.slane %v729, 4
      %v731 = vadd.f32 %v729, %v730
      %v732 = vrot.slane %v731, 2
      %v733 = vadd.f32 %v731, %v732
      %v734 = vrot.slane %v733, 1
      %v735 = vadd.f32 %v733, %v734
      %s736 = vtos %v735
      %v737 = vstv %s736
      %v738 = vadd.f32 %v695, %v737
      %vm739 = vcmask 0
      %740 = vst.msk [vmem:[%s217] sm:$0x1] %vm739, %v738
      %p741 = scmp.lt.s32.totalorder %s17, 1
      %s742 = scalar_select %p741, %s17, 1
      %s743 = scalar_lea.vmem %s2, %s742
      // Predicated region
      $region33: #{edge_criterion.1} parent=27 // pred_check
        %p744 = pneg %p107
      $region34: #{edge_criterion.1} parent=27 // pred_check_branch
        %746 = sbr.rel (%p744) target = $region36
      $region35: #{edge_criterion.1} parent=27 // pred_region
        _
      $region36: #{edge_criterion.1} parent=27 // pred_fallthru
        _
    $region28: #{edge_criterion.1} parent=5 // pred_fallthru
      _
    %p747 = scmp.le.s32.totalorder 2, %s8
    // Predicated region
    $region37: #{edge_criterion.1} parent=5 // pred_check
      %p748 = pneg %p747
    $region38: #{edge_criterion.1} parent=5 // pred_check_branch
      %750 = sbr.rel (%p748) target = $region40
    $region39: #{edge_criterion.1} parent=5 // pred_region
      %s751 = ssub.s32 %s8, 2
      // Predicated region
      $region41: #{edge_criterion.1} parent=39 // pred_check
        %p752 = pneg %p113
      $region42: #{edge_criterion.1} parent=39 // pred_check_branch
        %754 = sbr.rel (%p752) target = $region44
      $region43: #{edge_criterion.1} parent=39 // pred_region
        %p755 = scmp.lt.s32.totalorder %s19, 1
        %s756 = scalar_select %p755, %s19, 1
        %s757 = scalar_lea.vmem %s2, %s756
      $region44: #{edge_criterion.1} parent=39 // pred_fallthru
        _
    $region40: #{edge_criterion.1} parent=5 // pred_fallthru
      _
  $region6: #{edge_criterion.1} parent=0 // loop_footer
    %s12 = sadd.s32 1, %s8
  $region7: #{edge_criterion.1} parent=0 // loop_footer_branch
    %7 = sbr.rel target = $region3
  $region8: #{edge_criterion.1} parent=0 // loop_exit
    _

</llo_original>
